<compile_context>
chip_gen: v6e
topology: v6e:2x2x1
jax: 0.10.0
libtpu: 0.0.40
codegen_flags: <defaults>
</compile_context>

<pallas_src>
import functools

import jax
import jax.numpy as jnp
from jax.experimental import pallas as pl
from jax.experimental.pallas import tpu as pltpu

BN_EPS = 1e-5


def _round_up(v, m):
    return ((v + m - 1) // m) * m


# ------------------------------- Pallas kernel --------------------------------

def _conv_bn_relu_kernel(ksize, wp, cin_p, tile_q, slab_len,
                         x_hbm, w_ref, s_ref, b_ref, o_ref,
                         xbuf, kbuf, sem):
    """One (Cout, tile_q) output tile of the fused Conv+BN+ReLU.

    x_hbm : (Cin_p, L)              HBM (pl.ANY), bf16 padded/flattened input
    w_ref : (Cout, k*k*Cin_p)       VMEM, bf16 weights (unscaled), tap-major K ordering
    s_ref : (Cout, 1)               VMEM, f32 folded BN scale
    b_ref : (Cout, 1)               VMEM, f32 folded BN bias
    o_ref : (Cout, tile_q)          VMEM output tile (lane-dense, flattened spatial in lanes)
    xbuf  : (2, Cin_p, slab_len)    VMEM, double-buffered input slab (slab_len = tile_q + halo)
    kbuf  : (k*k*Cin_p, tile_q)     VMEM, stacked-K GEMM operand
    sem   : (2,) DMA semaphores
    """
    i = pl.program_id(0)
    n = pl.num_programs(0)
    slot = i % 2

    def slab_copy(tile_idx, buf_slot):
        q0 = pl.multiple_of(tile_idx * tile_q, tile_q)
        return pltpu.make_async_copy(
            x_hbm.at[:, pl.ds(q0, slab_len)], xbuf.at[buf_slot], sem.at[buf_slot])

    # Prime the pipeline at the first grid step (grid axis is sequential / "arbitrary").
    @pl.when(i == 0)
    def _():
        slab_copy(i, slot).start()          # i == 0, slot == 0 in this branch

    # Prefetch the next tile's slab into the other slot before waiting on the current one,
    # so its DMA overlaps this step's GEMM.
    @pl.when(i + 1 < n)
    def _():
        slab_copy(i + 1, 1 - slot).start()

    slab_copy(i, slot).wait()

    # Stack the k*k shifted (Cin_p, tile_q) views into one (k*k*Cin_p, tile_q) GEMM operand.
    src = xbuf.at[slot]                     # (Cin_p, slab_len) ref view
    for ki in range(ksize):
        for kj in range(ksize):
            tap = ki * ksize + kj
            off = ki * wp + kj              # static shift in the row-major flattened space
            kbuf[tap * cin_p:(tap + 1) * cin_p, :] = src[:, off:off + tile_q]

    # Single MXU GEMM with K = k*k*Cin_p, f32 accumulation.
    acc = jnp.dot(w_ref[...], kbuf[...], preferred_element_type=jnp.float32)  # (Cout, tile_q)

    # f32 epilogue: BN scale + bias + ReLU, then cast to the output dtype.
    o_ref[...] = jnp.maximum(acc * s_ref[...] + b_ref[...], 0.0).astype(o_ref.dtype)


# ------------------------------- Python wrapper --------------------------------

def conv_block(x, w, gamma, beta, mean, var, *, stride=1, padding=1, dilation=1,
               groups=1, eps=BN_EPS, tile_q=None, out_dtype=jnp.float32,
               vmem_limit_bytes=None):
    """ConvBlock forward: Conv2d(bias=False) + BatchNorm2d (eval, running stats) + ReLU.

    NCHW in / NCHW out, matching the PyTorch module.
    """
    # TODO(synk): only stride=1 / dilation=1 / groups=1 (ConvBlock's defaults) lower to the
    # flattened-shift Pallas path; other configurations are not implemented here.
    assert stride == 1 and dilation == 1 and groups == 1
    N, Cin, H, W = x.shape
    Cout, cin_w, KH, KW = w.shape
    assert cin_w == Cin and KH == KW
    k = KH
    Hp, Wp = H + 2 * padding, W + 2 * padding
    Ho, Wo = Hp - k + 1, Wp - k + 1

    # Flattened output enumeration q = n*Hp*Wp + ho*Wp + wo, *including* ghost rows/cols
    # (ho >= Ho or wo >= Wo) so every 3x3 tap is a single uniform static shift; ghost
    # positions produce garbage columns that are sliced away afterwards.
    Q = N * Hp * Wp
    if tile_q is None:
        # halo = (k-1)*(Wp+1) ~ 2*Wp -> keep the halo a small fraction of the tile.
        tile_q = min(8192, max(512, _round_up(8 * Wp, 128)))
    assert tile_q % 128 == 0
    tq = min(_round_up(tile_q, 128), _round_up(Q, 128))
    n_tiles = -(-Q // tq)
    halo = (k - 1) * (Wp + 1)
    halo_pad = _round_up(halo, 128)
    slab_len = tq + halo_pad
    L = n_tiles * tq + halo_pad              # source length so the last slab stays in-bounds

    cin_p = _round_up(Cin, 8)                # sublane-aligned stacked-K stores
    K2 = k * k * cin_p

    # BatchNorm (eval): y = relu(scale * conv(x, w) + bias); scale applied in-kernel (f32).
    scale1 = (gamma / jnp.sqrt(var + eps)).astype(jnp.float32)
    bn_scale = scale1.reshape(Cout, 1)
    bn_bias = (beta.astype(jnp.float32) - mean.astype(jnp.float32) * scale1).reshape(Cout, 1)

    # Weights: (Cout, Cin, k, k) -> (Cout, k*k*cin_p) bf16, tap-major K ordering matching kbuf.
    wt = jnp.transpose(w, (0, 2, 3, 1))                                   # (Cout, k, k, Cin)
    wt = jnp.pad(wt, ((0, 0), (0, 0), (0, 0), (0, cin_p - Cin)))
    wt = wt.reshape(Cout, K2).astype(jnp.bfloat16)

    # Pad spatially (+ channel pad to cin_p), flatten per channel, pad tail for halo/tiles,
    # cast to bf16 (one pass in XLA).
    xp = jnp.pad(x, ((0, 0), (0, cin_p - Cin), (padding, padding), (padding, padding)))
    xf = jnp.transpose(xp, (1, 0, 2, 3)).reshape(cin_p, Q)
    xf = jnp.pad(xf, ((0, 0), (0, L - Q))).astype(jnp.bfloat16)

    osz = jnp.dtype(out_dtype).itemsize
    if vmem_limit_bytes is None:
        est = (2 * cin_p * slab_len * 2          # double-buffered input slab (bf16)
               + K2 * tq * 2                     # stacked-K GEMM operand (bf16)
               + 2 * Cout * tq * osz             # Pallas output double-buffer
               + 2 * Cout * K2 * 2               # weights
               + 4 * Cout * 4)                   # BN scale/bias
        vmem_limit_bytes = min(100 * 1024 * 1024, max(32 * 1024 * 1024, 2 * est))

    kernel = functools.partial(_conv_bn_relu_kernel, k, Wp, cin_p, tq, slab_len)
    out_flat = pl.pallas_call(
        kernel,
        out_shape=jax.ShapeDtypeStruct((Cout, n_tiles * tq), out_dtype),
        grid=(n_tiles,),
        in_specs=[
            pl.BlockSpec(memory_space=pl.ANY),                      # raw HBM ref, manual DMA
            pl.BlockSpec((Cout, K2), lambda i: (0, 0)),             # weights, stay resident
            pl.BlockSpec((Cout, 1), lambda i: (0, 0)),              # BN scale
            pl.BlockSpec((Cout, 1), lambda i: (0, 0)),              # BN bias
        ],
        out_specs=pl.BlockSpec((Cout, tq), lambda i: (0, i)),       # lane-dense output tile
        scratch_shapes=[
            pltpu.VMEM((2, cin_p, slab_len), jnp.bfloat16),         # double-buffered slab
            pltpu.VMEM((K2, tq), jnp.bfloat16),                     # stacked-K GEMM operand
            pltpu.SemaphoreType.DMA((2,)),
        ],
        compiler_params=pltpu.CompilerParams(
            # Sequential grid: required for the cross-step prefetch / prime-at-0 pattern.
            dimension_semantics=("arbitrary",),
            vmem_limit_bytes=int(vmem_limit_bytes),
        ),
    )(xf, wt, bn_scale, bn_bias)

    out = out_flat[:, :Q].reshape(Cout, N, Hp, Wp)[:, :, :Ho, :Wo]
    return jnp.transpose(out, (1, 0, 2, 3))     # (N, Cout, Ho, Wo)


# ------------------------------ Pure-JAX reference ------------------------------

def _ref_conv_block(x, w, gamma, beta, mean, var, stride, padding, eps=BN_EPS):
    y = jax.lax.conv_general_dilated(
        x, w, window_strides=(stride, stride),
        padding=[(padding, padding), (padding, padding)],
        dimension_numbers=("NCHW", "OIHW", "NCHW"))
    scale = gamma / jnp.sqrt(var + eps)
    bias = beta - mean * scale
    y = y * scale.reshape(1, -1, 1, 1) + bias.reshape(1, -1, 1, 1)
    return jnp.maximum(y, 0.0)


# ------------------------------------ main --------------------------------------

if __name__ == "__main__":
    key = jax.random.PRNGKey(0)
    kx, kw, kg, kb, km, kv = jax.random.split(key, 6)
    N, Cin, H, W, Cout, K = 2, 4, 16, 16, 16, 3

    x = jax.random.normal(kx, (N, Cin, H, W), jnp.float32)
    w = 0.1 * jax.random.normal(kw, (Cout, Cin, K, K), jnp.float32)
    gamma = 1.0 + 0.1 * jax.random.normal(kg, (Cout,), jnp.float32)
    beta = 0.1 * jax.random.normal(kb, (Cout,), jnp.float32)
    mean = 0.1 * jax.random.normal(km, (Cout,), jnp.float32)
    var = 1.0 + jnp.abs(jax.random.normal(kv, (Cout,), jnp.float32))

    ref = jax.block_until_ready(_ref_conv_block(x, w, gamma, beta, mean, var, 1, 1))

    # Small tile so the demo exercises the multi-tile, double-buffered DMA path (3 tiles).
    out = jax.jit(functools.partial(conv_block, tile_q=256))(x, w, gamma, beta, mean, var)
    out = jax.block_until_ready(out)
    assert out.shape == (N, Cout, H, W), out.shape
    err = float(jnp.max(jnp.abs(out - ref)))
    assert err < 5e-2, f"max abs error (tiled path) = {err}"

    # Default (auto-tile) configuration.
    out2 = jax.block_until_ready(jax.jit(conv_block)(x, w, gamma, beta, mean, var))
    err2 = float(jnp.max(jnp.abs(out2 - ref)))
    assert err2 < 5e-2, f"max abs error (default tile) = {err2}"

    # bf16-output knob (halves output HBM traffic; consumer ConvBlock takes bf16 anyway).
    out3 = jax.jit(functools.partial(conv_block, out_dtype=jnp.bfloat16))(
        x, w, gamma, beta, mean, var)
    out3 = jax.block_until_ready(out3)
    err3 = float(jnp.max(jnp.abs(out3.astype(jnp.float32) - ref)))
    assert err3 < 1e-1, f"max abs error (bf16 out) = {err3}"

    print("KERNEL_OK")
</pallas_src>

<mosaic_0001>
module attributes {stable_mosaic.version = 11 : i64} {
  func.func @_conv_bn_relu_kernel(%arg0: i32, %arg1: memref<8x896xbf16, #tpu.memory_space<any>>, %arg2: memref<16x72xbf16, #tpu.memory_space<vmem>>, %arg3: memref<16x1xf32, #tpu.memory_space<vmem>>, %arg4: memref<16x1xf32, #tpu.memory_space<vmem>>, %arg5: memref<16x256xf32, #tpu.memory_space<vmem>>, %arg6: memref<2x8x384xbf16, #tpu.memory_space<vmem>>, %arg7: memref<72x256xbf16, #tpu.memory_space<vmem>>, %arg8: memref<2x!tpu.dma_semaphore, #tpu.memory_space<semaphore_mem>>) attributes {dimension_semantics = [#tpu.dimension_semantics<arbitrary>], iteration_bounds = array<i64: 3>, scalar_prefetch = 0 : i64, scratch_operands = 3 : i64, tpu.core_type = #tpu.core_type<tc>, window_params = [{}, {pipeline_mode = #tpu.pipeline_mode<synchronous>, transform_indices = @transform_1, window_bounds = array<i64: 16, 72>}, {pipeline_mode = #tpu.pipeline_mode<synchronous>, transform_indices = @transform_2, window_bounds = array<i64: 16, 1>}, {pipeline_mode = #tpu.pipeline_mode<synchronous>, transform_indices = @transform_3, window_bounds = array<i64: 16, 1>}, {transform_indices = @transform_4, window_bounds = array<i64: 16, 256>}]} {
    %c2_i32 = arith.constant 2 : i32
    %c0_i32 = arith.constant 0 : i32
    %0 = arith.cmpi eq, %c2_i32, %c0_i32 : i32
    %c1_i32 = arith.constant 1 : i32
    %1 = arith.select %0, %c1_i32, %c2_i32 : i32
    %2 = arith.remsi %arg0, %1 : i32
    %c0_i32_0 = arith.constant 0 : i32
    %3 = arith.cmpi ne, %2, %c0_i32_0 : i32
    %c0_i32_1 = arith.constant 0 : i32
    %4 = arith.cmpi slt, %2, %c0_i32_1 : i32
    %c0_i32_2 = arith.constant 0 : i32
    %5 = arith.cmpi slt, %1, %c0_i32_2 : i32
    %6 = arith.xori %4, %5 : i1
    %7 = arith.andi %6, %3 : i1
    %8 = arith.addi %2, %1 : i32
    %9 = arith.select %7, %8, %2 : i32
    %c0_i32_3 = arith.constant 0 : i32
    %10 = arith.cmpi eq, %arg0, %c0_i32_3 : i32
    %11 = arith.extui %10 : i1 to i32
    %c0_i32_4 = arith.constant 0 : i32
    %12 = arith.cmpi ne, %11, %c0_i32_4 : i32
    scf.if %12 {
      %c256_i32_58 = arith.constant 256 : i32
      %72 = arith.muli %arg0, %c256_i32_58 : i32
      %73 = tpu.assume_multiple %72, 256 : i32
      %c0_i32_59 = arith.constant 0 : i32
      %74 = tpu.memref_slice %arg1[%c0_i32_59, %73] : memref<8x896xbf16, #tpu.memory_space<any>> -> memref<8x384xbf16, #tpu.memory_space<any>>
      %c0_i32_60 = arith.constant 0 : i32
      %c0_i32_61 = arith.constant 0 : i32
      %75 = tpu.memref_slice %arg6[%9, %c0_i32_60, %c0_i32_61] : memref<2x8x384xbf16, #tpu.memory_space<vmem>> -> memref<1x8x384xbf16, #tpu.memory_space<vmem>>
      %76 = tpu.memref_squeeze %75 : memref<1x8x384xbf16, #tpu.memory_space<vmem>> -> memref<8x384xbf16, #tpu.memory_space<vmem>>
      %77 = tpu.memref_slice %arg8[%9] : memref<2x!tpu.dma_semaphore, #tpu.memory_space<semaphore_mem>> -> memref<1x!tpu.dma_semaphore, #tpu.memory_space<semaphore_mem>>
      %78 = tpu.memref_squeeze %77 : memref<1x!tpu.dma_semaphore, #tpu.memory_space<semaphore_mem>> -> memref<!tpu.dma_semaphore, #tpu.memory_space<semaphore_mem>>
      tpu.enqueue_dma source(%74 : memref<8x384xbf16, #tpu.memory_space<any>>) target(%76 : memref<8x384xbf16, #tpu.memory_space<vmem>>) target_semaphore(%78 : memref<!tpu.dma_semaphore, #tpu.memory_space<semaphore_mem>>)
    } else {
    }
    %c1_i32_5 = arith.constant 1 : i32
    %13 = arith.addi %arg0, %c1_i32_5 : i32
    %c3_i32 = arith.constant 3 : i32
    %14 = arith.cmpi slt, %13, %c3_i32 : i32
    %15 = arith.extui %14 : i1 to i32
    %c0_i32_6 = arith.constant 0 : i32
    %16 = arith.cmpi ne, %15, %c0_i32_6 : i32
    scf.if %16 {
      %c1_i32_58 = arith.constant 1 : i32
      %72 = arith.addi %arg0, %c1_i32_58 : i32
      %c1_i32_59 = arith.constant 1 : i32
      %73 = arith.subi %c1_i32_59, %9 : i32
      %c256_i32_60 = arith.constant 256 : i32
      %74 = arith.muli %72, %c256_i32_60 : i32
      %75 = tpu.assume_multiple %74, 256 : i32
      %c0_i32_61 = arith.constant 0 : i32
      %76 = tpu.memref_slice %arg1[%c0_i32_61, %75] : memref<8x896xbf16, #tpu.memory_space<any>> -> memref<8x384xbf16, #tpu.memory_space<any>>
      %c0_i32_62 = arith.constant 0 : i32
      %c0_i32_63 = arith.constant 0 : i32
      %77 = tpu.memref_slice %arg6[%73, %c0_i32_62, %c0_i32_63] : memref<2x8x384xbf16, #tpu.memory_space<vmem>> -> memref<1x8x384xbf16, #tpu.memory_space<vmem>>
      %78 = tpu.memref_squeeze %77 : memref<1x8x384xbf16, #tpu.memory_space<vmem>> -> memref<8x384xbf16, #tpu.memory_space<vmem>>
      %79 = tpu.memref_slice %arg8[%73] : memref<2x!tpu.dma_semaphore, #tpu.memory_space<semaphore_mem>> -> memref<1x!tpu.dma_semaphore, #tpu.memory_space<semaphore_mem>>
      %80 = tpu.memref_squeeze %79 : memref<1x!tpu.dma_semaphore, #tpu.memory_space<semaphore_mem>> -> memref<!tpu.dma_semaphore, #tpu.memory_space<semaphore_mem>>
      tpu.enqueue_dma source(%76 : memref<8x384xbf16, #tpu.memory_space<any>>) target(%78 : memref<8x384xbf16, #tpu.memory_space<vmem>>) target_semaphore(%80 : memref<!tpu.dma_semaphore, #tpu.memory_space<semaphore_mem>>)
    } else {
    }
    %c256_i32 = arith.constant 256 : i32
    %17 = arith.muli %arg0, %c256_i32 : i32
    %18 = tpu.assume_multiple %17, 256 : i32
    %c0_i32_7 = arith.constant 0 : i32
    %19 = tpu.memref_slice %arg1[%c0_i32_7, %18] : memref<8x896xbf16, #tpu.memory_space<any>> -> memref<8x384xbf16, #tpu.memory_space<any>>
    %c0_i32_8 = arith.constant 0 : i32
    %c0_i32_9 = arith.constant 0 : i32
    %20 = tpu.memref_slice %arg6[%9, %c0_i32_8, %c0_i32_9] : memref<2x8x384xbf16, #tpu.memory_space<vmem>> -> memref<1x8x384xbf16, #tpu.memory_space<vmem>>
    %21 = tpu.memref_squeeze %20 : memref<1x8x384xbf16, #tpu.memory_space<vmem>> -> memref<8x384xbf16, #tpu.memory_space<vmem>>
    %22 = tpu.memref_slice %arg8[%9] : memref<2x!tpu.dma_semaphore, #tpu.memory_space<semaphore_mem>> -> memref<1x!tpu.dma_semaphore, #tpu.memory_space<semaphore_mem>>
    %23 = tpu.memref_squeeze %22 : memref<1x!tpu.dma_semaphore, #tpu.memory_space<semaphore_mem>> -> memref<!tpu.dma_semaphore, #tpu.memory_space<semaphore_mem>>
    tpu.wait_dma2 semaphore(%23 : memref<!tpu.dma_semaphore, #tpu.memory_space<semaphore_mem>>) src(%19 : memref<8x384xbf16, #tpu.memory_space<any>>) dst(%21 : memref<8x384xbf16, #tpu.memory_space<vmem>>)
    %c0_i32_10 = arith.constant 0 : i32
    %c0_i32_11 = arith.constant 0 : i32
    %24 = tpu.memref_slice %arg6[%9, %c0_i32_10, %c0_i32_11] : memref<2x8x384xbf16, #tpu.memory_space<vmem>> -> memref<1x8x384xbf16, #tpu.memory_space<vmem>>
    %25 = tpu.memref_squeeze %24 : memref<1x8x384xbf16, #tpu.memory_space<vmem>> -> memref<8x384xbf16, #tpu.memory_space<vmem>>
    %c0 = arith.constant 0 : index
    %c0_12 = arith.constant 0 : index
    %26 = vector.load %25[%c0, %c0_12] : memref<8x384xbf16, #tpu.memory_space<vmem>>, vector<8x256xbf16>
    %c0_13 = arith.constant 0 : index
    %c0_14 = arith.constant 0 : index
    %27 = vector.load %arg7[%c0_13, %c0_14] : memref<72x256xbf16, #tpu.memory_space<vmem>>, vector<8x256xbf16>
    tpu.vector_store %arg7[%c0_13, %c0_14], %26 {strides = array<i32>} : memref<72x256xbf16, #tpu.memory_space<vmem>>, vector<8x256xbf16>,
    %c0_i32_15 = arith.constant 0 : i32
    %c0_i32_16 = arith.constant 0 : i32
    %28 = tpu.memref_slice %arg6[%9, %c0_i32_15, %c0_i32_16] : memref<2x8x384xbf16, #tpu.memory_space<vmem>> -> memref<1x8x384xbf16, #tpu.memory_space<vmem>>
    %29 = tpu.memref_squeeze %28 : memref<1x8x384xbf16, #tpu.memory_space<vmem>> -> memref<8x384xbf16, #tpu.memory_space<vmem>>
    %c0_17 = arith.constant 0 : index
    %c1 = arith.constant 1 : index
    %30 = vector.load %29[%c0_17, %c1] : memref<8x384xbf16, #tpu.memory_space<vmem>>, vector<8x256xbf16>
    %c8 = arith.constant 8 : index
    %c0_18 = arith.constant 0 : index
    %31 = vector.load %arg7[%c8, %c0_18] : memref<72x256xbf16, #tpu.memory_space<vmem>>, vector<8x256xbf16>
    tpu.vector_store %arg7[%c8, %c0_18], %30 {strides = array<i32>} : memref<72x256xbf16, #tpu.memory_space<vmem>>, vector<8x256xbf16>,
    %c0_i32_19 = arith.constant 0 : i32
    %c0_i32_20 = arith.constant 0 : i32
    %32 = tpu.memref_slice %arg6[%9, %c0_i32_19, %c0_i32_20] : memref<2x8x384xbf16, #tpu.memory_space<vmem>> -> memref<1x8x384xbf16, #tpu.memory_space<vmem>>
    %33 = tpu.memref_squeeze %32 : memref<1x8x384xbf16, #tpu.memory_space<vmem>> -> memref<8x384xbf16, #tpu.memory_space<vmem>>
    %c0_21 = arith.constant 0 : index
    %c2 = arith.constant 2 : index
    %34 = vector.load %33[%c0_21, %c2] : memref<8x384xbf16, #tpu.memory_space<vmem>>, vector<8x256xbf16>
    %c16 = arith.constant 16 : index
    %c0_22 = arith.constant 0 : index
    %35 = vector.load %arg7[%c16, %c0_22] : memref<72x256xbf16, #tpu.memory_space<vmem>>, vector<8x256xbf16>
    tpu.vector_store %arg7[%c16, %c0_22], %34 {strides = array<i32>} : memref<72x256xbf16, #tpu.memory_space<vmem>>, vector<8x256xbf16>,
    %c0_i32_23 = arith.constant 0 : i32
    %c0_i32_24 = arith.constant 0 : i32
    %36 = tpu.memref_slice %arg6[%9, %c0_i32_23, %c0_i32_24] : memref<2x8x384xbf16, #tpu.memory_space<vmem>> -> memref<1x8x384xbf16, #tpu.memory_space<vmem>>
    %37 = tpu.memref_squeeze %36 : memref<1x8x384xbf16, #tpu.memory_space<vmem>> -> memref<8x384xbf16, #tpu.memory_space<vmem>>
    %c0_25 = arith.constant 0 : index
    %c18 = arith.constant 18 : index
    %38 = vector.load %37[%c0_25, %c18] : memref<8x384xbf16, #tpu.memory_space<vmem>>, vector<8x256xbf16>
    %c24 = arith.constant 24 : index
    %c0_26 = arith.constant 0 : index
    %39 = vector.load %arg7[%c24, %c0_26] : memref<72x256xbf16, #tpu.memory_space<vmem>>, vector<8x256xbf16>
    tpu.vector_store %arg7[%c24, %c0_26], %38 {strides = array<i32>} : memref<72x256xbf16, #tpu.memory_space<vmem>>, vector<8x256xbf16>,
    %c0_i32_27 = arith.constant 0 : i32
    %c0_i32_28 = arith.constant 0 : i32
    %40 = tpu.memref_slice %arg6[%9, %c0_i32_27, %c0_i32_28] : memref<2x8x384xbf16, #tpu.memory_space<vmem>> -> memref<1x8x384xbf16, #tpu.memory_space<vmem>>
    %41 = tpu.memref_squeeze %40 : memref<1x8x384xbf16, #tpu.memory_space<vmem>> -> memref<8x384xbf16, #tpu.memory_space<vmem>>
    %c0_29 = arith.constant 0 : index
    %c19 = arith.constant 19 : index
    %42 = vector.load %41[%c0_29, %c19] : memref<8x384xbf16, #tpu.memory_space<vmem>>, vector<8x256xbf16>
    %c32 = arith.constant 32 : index
    %c0_30 = arith.constant 0 : index
    %43 = vector.load %arg7[%c32, %c0_30] : memref<72x256xbf16, #tpu.memory_space<vmem>>, vector<8x256xbf16>
    tpu.vector_store %arg7[%c32, %c0_30], %42 {strides = array<i32>} : memref<72x256xbf16, #tpu.memory_space<vmem>>, vector<8x256xbf16>,
    %c0_i32_31 = arith.constant 0 : i32
    %c0_i32_32 = arith.constant 0 : i32
    %44 = tpu.memref_slice %arg6[%9, %c0_i32_31, %c0_i32_32] : memref<2x8x384xbf16, #tpu.memory_space<vmem>> -> memref<1x8x384xbf16, #tpu.memory_space<vmem>>
    %45 = tpu.memref_squeeze %44 : memref<1x8x384xbf16, #tpu.memory_space<vmem>> -> memref<8x384xbf16, #tpu.memory_space<vmem>>
    %c0_33 = arith.constant 0 : index
    %c20 = arith.constant 20 : index
    %46 = vector.load %45[%c0_33, %c20] : memref<8x384xbf16, #tpu.memory_space<vmem>>, vector<8x256xbf16>
    %c40 = arith.constant 40 : index
    %c0_34 = arith.constant 0 : index
    %47 = vector.load %arg7[%c40, %c0_34] : memref<72x256xbf16, #tpu.memory_space<vmem>>, vector<8x256xbf16>
    tpu.vector_store %arg7[%c40, %c0_34], %46 {strides = array<i32>} : memref<72x256xbf16, #tpu.memory_space<vmem>>, vector<8x256xbf16>,
    %c0_i32_35 = arith.constant 0 : i32
    %c0_i32_36 = arith.constant 0 : i32
    %48 = tpu.memref_slice %arg6[%9, %c0_i32_35, %c0_i32_36] : memref<2x8x384xbf16, #tpu.memory_space<vmem>> -> memref<1x8x384xbf16, #tpu.memory_space<vmem>>
    %49 = tpu.memref_squeeze %48 : memref<1x8x384xbf16, #tpu.memory_space<vmem>> -> memref<8x384xbf16, #tpu.memory_space<vmem>>
    %c0_37 = arith.constant 0 : index
    %c36 = arith.constant 36 : index
    %50 = vector.load %49[%c0_37, %c36] : memref<8x384xbf16, #tpu.memory_space<vmem>>, vector<8x256xbf16>
    %c48 = arith.constant 48 : index
    %c0_38 = arith.constant 0 : index
    %51 = vector.load %arg7[%c48, %c0_38] : memref<72x256xbf16, #tpu.memory_space<vmem>>, vector<8x256xbf16>
    tpu.vector_store %arg7[%c48, %c0_38], %50 {strides = array<i32>} : memref<72x256xbf16, #tpu.memory_space<vmem>>, vector<8x256xbf16>,
    %c0_i32_39 = arith.constant 0 : i32
    %c0_i32_40 = arith.constant 0 : i32
    %52 = tpu.memref_slice %arg6[%9, %c0_i32_39, %c0_i32_40] : memref<2x8x384xbf16, #tpu.memory_space<vmem>> -> memref<1x8x384xbf16, #tpu.memory_space<vmem>>
    %53 = tpu.memref_squeeze %52 : memref<1x8x384xbf16, #tpu.memory_space<vmem>> -> memref<8x384xbf16, #tpu.memory_space<vmem>>
    %c0_41 = arith.constant 0 : index
    %c37 = arith.constant 37 : index
    %54 = vector.load %53[%c0_41, %c37] : memref<8x384xbf16, #tpu.memory_space<vmem>>, vector<8x256xbf16>
    %c56 = arith.constant 56 : index
    %c0_42 = arith.constant 0 : index
    %55 = vector.load %arg7[%c56, %c0_42] : memref<72x256xbf16, #tpu.memory_space<vmem>>, vector<8x256xbf16>
    tpu.vector_store %arg7[%c56, %c0_42], %54 {strides = array<i32>} : memref<72x256xbf16, #tpu.memory_space<vmem>>, vector<8x256xbf16>,
    %c0_i32_43 = arith.constant 0 : i32
    %c0_i32_44 = arith.constant 0 : i32
    %56 = tpu.memref_slice %arg6[%9, %c0_i32_43, %c0_i32_44] : memref<2x8x384xbf16, #tpu.memory_space<vmem>> -> memref<1x8x384xbf16, #tpu.memory_space<vmem>>
    %57 = tpu.memref_squeeze %56 : memref<1x8x384xbf16, #tpu.memory_space<vmem>> -> memref<8x384xbf16, #tpu.memory_space<vmem>>
    %c0_45 = arith.constant 0 : index
    %c38 = arith.constant 38 : index
    %58 = vector.load %57[%c0_45, %c38] : memref<8x384xbf16, #tpu.memory_space<vmem>>, vector<8x256xbf16>
    %c64 = arith.constant 64 : index
    %c0_46 = arith.constant 0 : index
    %59 = vector.load %arg7[%c64, %c0_46] : memref<72x256xbf16, #tpu.memory_space<vmem>>, vector<8x256xbf16>
    tpu.vector_store %arg7[%c64, %c0_46], %58 {strides = array<i32>} : memref<72x256xbf16, #tpu.memory_space<vmem>>, vector<8x256xbf16>,
    %c0_47 = arith.constant 0 : index
    %c0_48 = arith.constant 0 : index
    %60 = vector.load %arg2[%c0_47, %c0_48] : memref<16x72xbf16, #tpu.memory_space<vmem>>, vector<16x72xbf16>
    %c0_49 = arith.constant 0 : index
    %c0_50 = arith.constant 0 : index
    %61 = vector.load %arg7[%c0_49, %c0_50] : memref<72x256xbf16, #tpu.memory_space<vmem>>, vector<72x256xbf16>
    %cst = arith.constant dense<0.000000e+00> : vector<16x256xf32>
    %62 = tpu.matmul %60, %61, %cst {dimension_numbers = #tpu.dot_dimension_numbers<[1], [0], [0], [1], [0, 0, 1, 1], [], []>} : vector<16x72xbf16>, vector<72x256xbf16>, vector<16x256xf32> -> vector<16x256xf32>
    %c0_51 = arith.constant 0 : index
    %c0_52 = arith.constant 0 : index
    %63 = vector.load %arg3[%c0_51, %c0_52] : memref<16x1xf32, #tpu.memory_space<vmem>>, vector<16x1xf32>
    %64 = vector.broadcast %63 : vector<16x1xf32> to vector<16x256xf32>
    %65 = arith.mulf %62, %64 : vector<16x256xf32>
    %c0_53 = arith.constant 0 : index
    %c0_54 = arith.constant 0 : index
    %66 = vector.load %arg4[%c0_53, %c0_54] : memref<16x1xf32, #tpu.memory_space<vmem>>, vector<16x1xf32>
    %67 = vector.broadcast %66 : vector<16x1xf32> to vector<16x256xf32>
    %68 = arith.addf %65, %67 : vector<16x256xf32>
    %cst_55 = arith.constant 0.000000e+00 : f32
    %69 = vector.broadcast %cst_55 : f32 to vector<16x256xf32>
    %70 = arith.maximumf %68, %69 : vector<16x256xf32>
    %c0_56 = arith.constant 0 : index
    %c0_57 = arith.constant 0 : index
    %71 = vector.load %arg5[%c0_56, %c0_57] : memref<16x256xf32, #tpu.memory_space<vmem>>, vector<16x256xf32>
    tpu.vector_store %arg5[%c0_56, %c0_57], %70 {strides = array<i32>} : memref<16x256xf32, #tpu.memory_space<vmem>>, vector<16x256xf32>,
    return
  }
  func.func @transform_1(%arg0: i32) -> (i32, i32) {
    %c0_i32 = arith.constant 0 : i32
    %c0_i32_0 = arith.constant 0 : i32
    %c0_i32_1 = arith.constant 0 : i32
    return %c0_i32, %c0_i32_0 : i32, i32
  }
  func.func @transform_2(%arg0: i32) -> (i32, i32) {
    %c0_i32 = arith.constant 0 : i32
    %c0_i32_0 = arith.constant 0 : i32
    %c0_i32_1 = arith.constant 0 : i32
    return %c0_i32, %c0_i32_0 : i32, i32
  }
  func.func @transform_3(%arg0: i32) -> (i32, i32) {
    %c0_i32 = arith.constant 0 : i32
    %c0_i32_0 = arith.constant 0 : i32
    %c0_i32_1 = arith.constant 0 : i32
    return %c0_i32, %c0_i32_0 : i32, i32
  }
  func.func @transform_4(%arg0: i32) -> (i32, i32) {
    %c0_i32 = arith.constant 0 : i32
    %c0_i32_0 = arith.constant 0 : i32
    return %c0_i32, %arg0 : i32, i32
  }
}

</mosaic_0001>

<llo_original>
// kernel: conv_block.1
$region0: #{conv_block.1}
  #allocation0 [shape = 'u32[]', space=smem, size = 0x4, offset = 0x4, fixed_abs, tag = 'smem constant byte address 0x4 - core index']
  #allocation1 [shape = 'u32[144,128]{1,0:T(1,128)}', space=vmem, size = 0x12000, scoped, tag = 'internal scratch']
  #allocation2 [shape = 'bf16[2,8,384]{2,1,0:T(8,128)(2,1)}', space=vmem, size = 0x3000, scoped, tag = 'scratch operand']
  #allocation3 [shape = 'bf16[72,256]{1,0:T(8,128)(2,1)}', space=vmem, size = 0x9000, scoped, tag = 'scratch operand']
  #allocation4 [shape = 's32[2]{0}', space=sflag, size = 0x8, scoped, tag = 'scratch operand']
  #allocation6 [shape = 's32[]', space=sflag, size = 0x4, offset = 0, fixed_abs, tag = 'sflag constant byte address 0x0 - dummy sync flag']
  #allocation7 [shape = 's32[]', space=sflag, size = 0x4, offset = 0, fixed_abs, tag = 'sflag constant byte address 0x0 - dummy sync flag']
  %s0 = inlined_call_operand.vmem [shape: bf16[8,896], index: 0, kind: input, shape index: {}]
  %s1 = inlined_call_operand.vmem [shape: bf16[16,72], index: 1, kind: input, shape index: {}]
  %s2 = inlined_call_operand.vmem [shape: f32[16,1], index: 2, kind: input, shape index: {}]
  %s3 = inlined_call_operand.vmem [shape: f32[16,1], index: 3, kind: input, shape index: {}]
  %s4 = inlined_call_operand.vmem [shape: f32[16,768], index: 4, kind: output, shape index: {}]
  %s5 = sld [smem:[#allocation0]]
  $region146: #{conv_block.1} parent=0
    _
  %s7 = ssub.s32 1, %s5
  %s8 = scalar_select 0, %s7, %s5
  $region1: #{conv_block.1} parent=0
    #allocation5 [shape = 'u8[32768]{0}', space=vmem, size = 0x8000, scoped, tag = 'output window, operand 0']
    loop: start=0, step=1, limit=5
    $region2: #{conv_block.1} parent=1 // loop_pre_header
      _
    $region3: #{conv_block.1} parent=1 // loop_header
      %s10 = sphi 0, %s14
      %p11 = scmp.ge.s32.totalorder %s10, 5
      %s18 = sphi 0, %s18
      %s20 = sphi 0, %s18
      %s21 = sphi 0, %s20
      %s35 = sphi 0, %s21
      %s39 = sphi 0, %s39
      %s41 = sphi 0, %s39
      %s42 = sphi 0, %s41
      %s56 = sphi 0, %s42
      %s60 = sphi 0, %s60
      %s62 = sphi 0, %s60
      %s63 = sphi 0, %s62
      %s77 = sphi 0, %s63
      %s83 = sphi 0, %s85
      %s86 = sphi 0, %s83
      %s87 = sphi 0, %s86
      %s103 = sphi 0, %s87
    $region4: #{conv_block.1} parent=1 // loop_header_branch
      %13 = sbr.rel (%p11) target = $region8
    $region5: #{conv_block.1} parent=1 // loop_body
      %s15 = ssub.s32 %s10, 1
      %s16 = ssub.s32 %s10, 2
      %s17 = sadd.s32 %s10, 1
      %s19 = sadd.s32 %s18, 1
      %p22 = scmp.eq.s32.totalorder %s10, 2
      %p23 = scmp.ne.s32.totalorder %s18, %s20
      %p24 = scmp.eq.s32.totalorder %s10, 0
      %p25 = por %p23, %p24
      %p26 = scmp.ne.s32.totalorder %s18, %s20
      %p27 = scmp.eq.s32.totalorder %s15, 2
      %p28 = por %p26, %p27
      %p29 = scmp.ne.s32.totalorder %s20, %s21
      %p30 = scmp.eq.s32.totalorder %s15, 0
      %p31 = por %p29, %p30
      %p32 = scmp.ne.s32.totalorder %s20, %s21
      %p33 = scmp.eq.s32.totalorder %s16, 2
      %p34 = por %p32, %p33
      %p36 = scmp.ne.s32.totalorder %s21, %s35
      %p37 = scmp.eq.s32.totalorder %s16, 0
      %p38 = por %p36, %p37
      %s40 = sadd.s32 %s39, 1
      %p43 = scmp.eq.s32.totalorder %s10, 2
      %p44 = scmp.ne.s32.totalorder %s39, %s41
      %p45 = scmp.eq.s32.totalorder %s10, 0
      %p46 = por %p44, %p45
      %p47 = scmp.ne.s32.totalorder %s39, %s41
      %p48 = scmp.eq.s32.totalorder %s15, 2
      %p49 = por %p47, %p48
      %p50 = scmp.ne.s32.totalorder %s41, %s42
      %p51 = scmp.eq.s32.totalorder %s15, 0
      %p52 = por %p50, %p51
      %p53 = scmp.ne.s32.totalorder %s41, %s42
      %p54 = scmp.eq.s32.totalorder %s16, 2
      %p55 = por %p53, %p54
      %p57 = scmp.ne.s32.totalorder %s42, %s56
      %p58 = scmp.eq.s32.totalorder %s16, 0
      %p59 = por %p57, %p58
      %s61 = sadd.s32 %s60, 1
      %p64 = scmp.eq.s32.totalorder %s10, 2
      %p65 = scmp.ne.s32.totalorder %s60, %s62
      %p66 = scmp.eq.s32.totalorder %s10, 0
      %p67 = por %p65, %p66
      %p68 = scmp.ne.s32.totalorder %s60, %s62
      %p69 = scmp.eq.s32.totalorder %s15, 2
      %p70 = por %p68, %p69
      %p71 = scmp.ne.s32.totalorder %s62, %s63
      %p72 = scmp.eq.s32.totalorder %s15, 0
      %p73 = por %p71, %p72
      %p74 = scmp.ne.s32.totalorder %s62, %s63
      %p75 = scmp.eq.s32.totalorder %s16, 2
      %p76 = por %p74, %p75
      %p78 = scmp.ne.s32.totalorder %s63, %s77
      %p79 = scmp.eq.s32.totalorder %s16, 0
      %p80 = por %p78, %p79
      %s81 = ssub.s32 %s10, %s17
      %p82 = scmp.eq.s32.totalorder %s81, 0
      %s84 = sadd.s32 %s83, 1
      %s85 = scalar_select %p82, %s83, %s84
      %p88 = pneg %p82
      %p89 = scmp.eq.s32.totalorder %s10, 2
      %p90 = por %p88, %p89
      %p91 = scmp.ne.s32.totalorder %s83, %s86
      %p92 = scmp.eq.s32.totalorder %s10, 0
      %p93 = por %p91, %p92
      %p94 = scmp.ne.s32.totalorder %s83, %s86
      %p95 = scmp.eq.s32.totalorder %s15, 2
      %p96 = por %p94, %p95
      %p97 = scmp.ne.s32.totalorder %s86, %s87
      %p98 = scmp.eq.s32.totalorder %s15, 0
      %p99 = por %p97, %p98
      %p100 = scmp.ne.s32.totalorder %s86, %s87
      %p101 = scmp.eq.s32.totalorder %s16, 2
      %p102 = por %p100, %p101
      %p104 = scmp.ne.s32.totalorder %s87, %s103
      %p105 = scmp.eq.s32.totalorder %s16, 0
      %p106 = por %p104, %p105
      %p107 = scmp.le.s32.totalorder 1, %s10
      %p108 = scmp.lt.s32.totalorder %s10, 4
      %p109 = pnand %p107, %p108
      %p110 = pneg %p109
      // Predicated region
      $region9: #{conv_block.1} parent=5 // pred_check
        _
      $region10: #{conv_block.1} parent=5 // pred_check_branch
        %112 = sbr.rel (%p109) target = $region12
      $region11: #{conv_block.1} parent=5 // pred_region
        %s113 = ssub.s32 %s10, 1
        // Predicated region
        $region13: #{conv_block.1} parent=11 // pred_check
          %p114 = pneg %p31
        $region14: #{conv_block.1} parent=11 // pred_check_branch
          %116 = sbr.rel (%p114) target = $region16
        $region15: #{conv_block.1} parent=11 // pred_region
          _
        $region16: #{conv_block.1} parent=11 // pred_fallthru
          _
        // Predicated region
        $region17: #{conv_block.1} parent=11 // pred_check
          %p117 = pneg %p52
        $region18: #{conv_block.1} parent=11 // pred_check_branch
          %119 = sbr.rel (%p117) target = $region20
        $region19: #{conv_block.1} parent=11 // pred_region
          _
        $region20: #{conv_block.1} parent=11 // pred_fallthru
          _
        // Predicated region
        $region21: #{conv_block.1} parent=11 // pred_check
          %p120 = pneg %p73
        $region22: #{conv_block.1} parent=11 // pred_check_branch
          %122 = sbr.rel (%p120) target = $region24
        $region23: #{conv_block.1} parent=11 // pred_region
          _
        $region24: #{conv_block.1} parent=11 // pred_fallthru
          _
      $region12: #{conv_block.1} parent=5 // pred_fallthru
        _
      %p123 = scmp.lt.s32.totalorder %s10, 3
      // Predicated region
      $region25: #{conv_block.1} parent=5 // pred_check
        %p124 = pneg %p123
      $region26: #{conv_block.1} parent=5 // pred_check_branch
        %126 = sbr.rel (%p124) target = $region28
      $region27: #{conv_block.1} parent=5 // pred_region
        _
      $region28: #{conv_block.1} parent=5 // pred_fallthru
        _
      %p127 = scmp.le.s32.totalorder 1, %s10
      %p128 = scmp.lt.s32.totalorder %s10, 4
      %p129 = pnand %p127, %p128
      %p130 = pneg %p129
      // Predicated region
      $region29: #{conv_block.1} parent=5 // pred_check
        _
      $region30: #{conv_block.1} parent=5 // pred_check_branch
        %132 = sbr.rel (%p129) target = $region32
      $region31: #{conv_block.1} parent=5 // pred_region
        %s133 = ssub.s32 %s10, 1
        %p134 = pneg %p31
        %p135 = pneg %p28
        %p136 = pneg %p52
        %p137 = pneg %p49
        %p138 = pneg %p73
        %p139 = pneg %p70
        %p140 = pneg %p99
        %p141 = pneg %p96
        %s142 = sand.u32 %s86, 1
        %s143 = sand.u32 %s86, 1
        %s144 = smul.addr %s143, 32
        %s145 = scalar_lea.vmem [#allocation5], %s144
        %s146 = smul.u32 2, %s15
        %p148 = scmp.lt.s32.totalorder %s15, 0
        %s149 = ssub.s32 0, %s15
        %s150 = scalar_select %p148, %s149, %s15
        %s151 = sand.u32 %s150, 1
        %s152 = ssub.s32 0, %s151
        %s153 = scalar_select %p148, %s152, %s151
        %p154 = scmp.ne.s32.totalorder %s153, 0
        %p155 = scmp.lt.s32.totalorder %s153, 0
        %p156 = pnand %p155, %p154
        %p157 = pneg %p156
        %s158 = sadd.s32 %s153, 2
        %s159 = scalar_select %p157, %s158, %s153
        %p160 = scmp.eq.s32.totalorder %s15, 0
        // Predicated region
        $region33: #{conv_block.1} parent=31 // pred_check
          %p161 = pneg %p160
        $region34: #{conv_block.1} parent=31 // pred_check_branch
          %163 = sbr.rel (%p161) target = $region36
        $region35: #{conv_block.1} parent=31 // pred_region
          %s164 = smul.u32 %s15, 256
          %s165 = sshra.s32 %s164, 7
          %s166 = sand.u32 %s164, 127
          %s167 = smul.addr %s165, 4
          %s168 = scalar_lea.vmem %s0, %s167
          %s169 = smul.u32 %s159, 3
          %s170 = smul.addr %s169, 4
          %s171 = scalar_lea.vmem [#allocation2], %s170
          %s172 = scalar_lea.sflag [#allocation4], %s159
          %p174 = scmp.lt.u32.totalorder 12, 8
          %p175 = pneg %p174
          // Predicated region
          $region37: #{conv_block.1} parent=35 // pred_check
            _
          $region38: #{conv_block.1} parent=35 // pred_check_branch
            %177 = sbr.rel (%p174) target = $region40
          $region39: #{conv_block.1} parent=35 // pred_region
            %s193 = sand.u32 12, 7
            %p194 = scmp.eq.s32.totalorder %s193, 0
            %p195 = pneg %p194
            // Predicated region
            $region52: #{conv_block.1} parent=39 // pred_check
              _
            $region53: #{conv_block.1} parent=39 // pred_check_branch
              %197 = sbr.rel (%p194) target = $region55
            $region54: #{conv_block.1} parent=39 // pred_region
              %s198 = sand.u32 12, 7
              %s199 = ssub.s32 12, %s198
              %s200 = scalar_lea.vmem %s168, %s199
              %s201 = ssub.s32 12, %s198
              %s202 = scalar_lea.vmem %s171, %s201 [#allocation2]
              loop: start=0, step=1, limit=1
              $region56: #{conv_block.1} parent=54 // loop_pre_header
                _
              $region57: #{conv_block.1} parent=54 // loop_header
                %s204 = sphi 0, %s208
                %p205 = scmp.ge.s32.totalorder %s204, 1
                %s209 = sphi %s168, %s168
                %s210 = sphi %s171, %s171
              $region58: #{conv_block.1} parent=54 // loop_header_branch
                %207 = sbr.rel (%p205) target = $region62
              $region59: #{conv_block.1} parent=54 // loop_body
                %v211 = vld [vmem:[%s209] sm:$0xff]
                %212 = vst [vmem:[%s210] sm:$0xff] %v211
              $region60: #{conv_block.1} parent=54 // loop_footer
                %s208 = sadd.s32 1, %s204
              $region61: #{conv_block.1} parent=54 // loop_footer_branch
                %203 = sbr.rel target = $region57
              $region62: #{conv_block.1} parent=54 // loop_exit
                _
              %s213 = sshll.u32 1, %s198
              %s214 = ssub.s32 %s213, 1
              loop: start=0, step=1, limit=1
              $region63: #{conv_block.1} parent=54 // loop_pre_header
                _
              $region64: #{conv_block.1} parent=54 // loop_header
                %s216 = sphi 0, %s220
                %p217 = scmp.ge.s32.totalorder %s216, 1
                %s221 = sphi %s200, %s200
                %s222 = sphi %s202, %s202
              $region65: #{conv_block.1} parent=54 // loop_header_branch
                %219 = sbr.rel (%p217) target = $region69
              $region66: #{conv_block.1} parent=54 // loop_body
                %v223 = vld [vmem:[%s221] sm:%s214]
                %224 = vst [vmem:[%s222] sm:%s214] %v223
              $region67: #{conv_block.1} parent=54 // loop_footer
                %s220 = sadd.s32 1, %s216
              $region68: #{conv_block.1} parent=54 // loop_footer_branch
                %215 = sbr.rel target = $region64
              $region69: #{conv_block.1} parent=54 // loop_exit
                _
            $region55: #{conv_block.1} parent=39 // pred_fallthru
              _
          $region40: #{conv_block.1} parent=35 // pred_fallthru
            _
          // Predicated region
          $region41: #{conv_block.1} parent=35 // pred_check
            %p178 = pneg %p174
          $region42: #{conv_block.1} parent=35 // pred_check_branch
            %180 = sbr.rel (%p178) target = $region44
          $region43: #{conv_block.1} parent=35 // pred_region
            %s181 = sshll.u32 1, 12
            %s182 = ssub.s32 %s181, 1
            loop: start=0, step=1, limit=1
            $region45: #{conv_block.1} parent=43 // loop_pre_header
              _
            $region46: #{conv_block.1} parent=43 // loop_header
              %s184 = sphi 0, %s188
              %p185 = scmp.ge.s32.totalorder %s184, 1
              %s189 = sphi %s168, %s168
              %s190 = sphi %s171, %s171
            $region47: #{conv_block.1} parent=43 // loop_header_branch
              %187 = sbr.rel (%p185) target = $region51
            $region48: #{conv_block.1} parent=43 // loop_body
              %v191 = vld [vmem:[%s189] sm:%s182]
              %192 = vst [vmem:[%s190] sm:%s182] %v191
            $region49: #{conv_block.1} parent=43 // loop_footer
              %s188 = sadd.s32 1, %s184
            $region50: #{conv_block.1} parent=43 // loop_footer_branch
              %183 = sbr.rel target = $region46
            $region51: #{conv_block.1} parent=43 // loop_exit
              _
          $region44: #{conv_block.1} parent=35 // pred_fallthru
            _
          // Predicated region
          $region70: #{conv_block.1} parent=35 // pred_check
            _
          $region71: #{conv_block.1} parent=35 // pred_check_branch
            %227 = sbr.rel (0) target = $region73
          $region72: #{conv_block.1} parent=35 // pred_region
            %228 = vsyncadd %s172, 192
          $region73: #{conv_block.1} parent=35 // pred_fallthru
            _
        $region36: #{conv_block.1} parent=31 // pred_fallthru
          _
        %s229 = sadd.s32 %s15, 1
        %p230 = scmp.lt.s32.totalorder %s229, 3
        // Predicated region
        $region74: #{conv_block.1} parent=31 // pred_check
          %p231 = pneg %p230
        $region75: #{conv_block.1} parent=31 // pred_check_branch
          %233 = sbr.rel (%p231) target = $region77
        $region76: #{conv_block.1} parent=31 // pred_region
          %s234 = ssub.s32 1, %s159
          %s235 = smul.u32 %s229, 256
          %s236 = sshra.s32 %s235, 7
          %s237 = sand.u32 %s235, 127
          %s238 = smul.addr %s236, 4
          %s239 = scalar_lea.vmem %s0, %s238
          %s240 = smul.u32 %s234, 3
          %s241 = smul.addr %s240, 4
          %s242 = scalar_lea.vmem [#allocation2], %s241
          %s243 = scalar_lea.sflag [#allocation4], %s234
          %p245 = scmp.lt.u32.totalorder 12, 8
          %p246 = pneg %p245
          // Predicated region
          $region78: #{conv_block.1} parent=76 // pred_check
            _
          $region79: #{conv_block.1} parent=76 // pred_check_branch
            %248 = sbr.rel (%p245) target = $region81
          $region80: #{conv_block.1} parent=76 // pred_region
            %s264 = sand.u32 12, 7
            %p265 = scmp.eq.s32.totalorder %s264, 0
            %p266 = pneg %p265
            // Predicated region
            $region93: #{conv_block.1} parent=80 // pred_check
              _
            $region94: #{conv_block.1} parent=80 // pred_check_branch
              %268 = sbr.rel (%p265) target = $region96
            $region95: #{conv_block.1} parent=80 // pred_region
              %s269 = sand.u32 12, 7
              %s270 = ssub.s32 12, %s269
              %s271 = scalar_lea.vmem %s239, %s270
              %s272 = ssub.s32 12, %s269
              %s273 = scalar_lea.vmem %s242, %s272 [#allocation2]
              loop: start=0, step=1, limit=1
              $region97: #{conv_block.1} parent=95 // loop_pre_header
                _
              $region98: #{conv_block.1} parent=95 // loop_header
                %s275 = sphi 0, %s279
                %p276 = scmp.ge.s32.totalorder %s275, 1
                %s280 = sphi %s239, %s239
                %s281 = sphi %s242, %s242
              $region99: #{conv_block.1} parent=95 // loop_header_branch
                %278 = sbr.rel (%p276) target = $region103
              $region100: #{conv_block.1} parent=95 // loop_body
                %v282 = vld [vmem:[%s280] sm:$0xff]
                %283 = vst [vmem:[%s281] sm:$0xff] %v282
              $region101: #{conv_block.1} parent=95 // loop_footer
                %s279 = sadd.s32 1, %s275
              $region102: #{conv_block.1} parent=95 // loop_footer_branch
                %274 = sbr.rel target = $region98
              $region103: #{conv_block.1} parent=95 // loop_exit
                _
              %s284 = sshll.u32 1, %s269
              %s285 = ssub.s32 %s284, 1
              loop: start=0, step=1, limit=1
              $region104: #{conv_block.1} parent=95 // loop_pre_header
                _
              $region105: #{conv_block.1} parent=95 // loop_header
                %s287 = sphi 0, %s291
                %p288 = scmp.ge.s32.totalorder %s287, 1
                %s292 = sphi %s271, %s271
                %s293 = sphi %s273, %s273
              $region106: #{conv_block.1} parent=95 // loop_header_branch
                %290 = sbr.rel (%p288) target = $region110
              $region107: #{conv_block.1} parent=95 // loop_body
                %v294 = vld [vmem:[%s292] sm:%s285]
                %295 = vst [vmem:[%s293] sm:%s285] %v294
              $region108: #{conv_block.1} parent=95 // loop_footer
                %s291 = sadd.s32 1, %s287
              $region109: #{conv_block.1} parent=95 // loop_footer_branch
                %286 = sbr.rel target = $region105
              $region110: #{conv_block.1} parent=95 // loop_exit
                _
            $region96: #{conv_block.1} parent=80 // pred_fallthru
              _
          $region81: #{conv_block.1} parent=76 // pred_fallthru
            _
          // Predicated region
          $region82: #{conv_block.1} parent=76 // pred_check
            %p249 = pneg %p245
          $region83: #{conv_block.1} parent=76 // pred_check_branch
            %251 = sbr.rel (%p249) target = $region85
          $region84: #{conv_block.1} parent=76 // pred_region
            %s252 = sshll.u32 1, 12
            %s253 = ssub.s32 %s252, 1
            loop: start=0, step=1, limit=1
            $region86: #{conv_block.1} parent=84 // loop_pre_header
              _
            $region87: #{conv_block.1} parent=84 // loop_header
              %s255 = sphi 0, %s259
              %p256 = scmp.ge.s32.totalorder %s255, 1
              %s260 = sphi %s239, %s239
              %s261 = sphi %s242, %s242
            $region88: #{conv_block.1} parent=84 // loop_header_branch
              %258 = sbr.rel (%p256) target = $region92
            $region89: #{conv_block.1} parent=84 // loop_body
              %v262 = vld [vmem:[%s260] sm:%s253]
              %263 = vst [vmem:[%s261] sm:%s253] %v262
            $region90: #{conv_block.1} parent=84 // loop_footer
              %s259 = sadd.s32 1, %s255
            $region91: #{conv_block.1} parent=84 // loop_footer_branch
              %254 = sbr.rel target = $region87
            $region92: #{conv_block.1} parent=84 // loop_exit
              _
          $region85: #{conv_block.1} parent=76 // pred_fallthru
            _
          // Predicated region
          $region111: #{conv_block.1} parent=76 // pred_check
            _
          $region112: #{conv_block.1} parent=76 // pred_check_branch
            %298 = sbr.rel (0) target = $region114
          $region113: #{conv_block.1} parent=76 // pred_region
            %299 = vsyncadd %s243, 192
          $region114: #{conv_block.1} parent=76 // pred_fallthru
            _
        $region77: #{conv_block.1} parent=31 // pred_fallthru
          _
        %s300 = smul.u32 %s15, 256
        %s301 = smul.u32 %s159, 3
        %s302 = smul.addr %s301, 4
        %s303 = scalar_lea.vmem [#allocation2], %s302
        %s304 = scalar_lea.sflag [#allocation4], %s159
        %s305 = smul.u32 4, 1
        %s306 = smul.u32 %s305, 3
        %s307 = sshll.u32 %s306, 4
        %308 = dma.done %s304, %s307
        %v309 = vld [vmem:[%s303] sm:$0xff]
        %310 = vst [vmem:[#allocation3] sm:$0xff] %v309
        %v311 = vld [vmem:[%s303] sm:$0xff]
        %v312 = vld [vmem:[%s303 + $0x8] sm:$0xf]
        %315 = vrot.lane.b32.xlu0 %v311, 127
        %v316 = vpop.permute.xlu0 %315
        %317 = vrot.lane.b32.xlu0 %v312, 127
        %v318 = vpop.permute.xlu0 %317
        %v319 = vrot.slane %v316, 4
        %v320 = vrot.slane %v318, 4
        %vm321 = vcmask 1043456
        %v322 = vsel %vm321, %v319, %v320
        %vm323 = vcmask 1039360
        %v324 = vsel %vm323, %v316, %v322
        %326 = vst [vmem:[#allocation3 + $0x8] sm:$0xff] %v324
        %v327 = vld [vmem:[%s303] sm:$0xff]
        %v328 = vld [vmem:[%s303 + $0x8] sm:$0xf]
        %331 = vrot.lane.b32.xlu0 %v327, 126
        %v332 = vpop.permute.xlu0 %331
        %333 = vrot.lane.b32.xlu0 %v328, 126
        %v334 = vpop.permute.xlu0 %333
        %v335 = vrot.slane %v332, 4
        %v336 = vrot.slane %v334, 4
        %v337 = vsel %vm321, %v335, %v336
        %vm338 = vcmask 1031168
        %v339 = vsel %vm338, %v332, %v337
        %341 = vst [vmem:[#allocation3 + $0x10] sm:$0xff] %v339
        %v342 = vld [vmem:[%s303] sm:$0xff]
        %v343 = vld [vmem:[%s303 + $0x8] sm:$0xf]
        %346 = vrot.lane.b32.xlu0 %v342, 110
        %v347 = vpop.permute.xlu0 %346
        %348 = vrot.lane.b32.xlu0 %v343, 110
        %v349 = vpop.permute.xlu0 %348
        %v350 = vrot.slane %v347, 4
        %v351 = vrot.slane %v349, 4
        %v352 = vsel %vm321, %v350, %v351
        %vm353 = vcmask 900096
        %v354 = vsel %vm353, %v347, %v352
        %356 = vst [vmem:[#allocation3 + $0x18] sm:$0xff] %v354
        %v357 = vld [vmem:[%s303] sm:$0xff]
        %v358 = vld [vmem:[%s303 + $0x8] sm:$0xf]
        %361 = vrot.lane.b32.xlu0 %v357, 109
        %v362 = vpop.permute.xlu0 %361
        %363 = vrot.lane.b32.xlu0 %v358, 109
        %v364 = vpop.permute.xlu0 %363
        %v365 = vrot.slane %v362, 4
        %v366 = vrot.slane %v364, 4
        %v367 = vsel %vm321, %v365, %v366
        %vm368 = vcmask 891904
        %v369 = vsel %vm368, %v362, %v367
        %371 = vst [vmem:[#allocation3 + $0x20] sm:$0xff] %v369
        %v372 = vld [vmem:[%s303] sm:$0xff]
        %v373 = vld [vmem:[%s303 + $0x8] sm:$0xf]
        %376 = vrot.lane.b32.xlu0 %v372, 108
        %v377 = vpop.permute.xlu0 %376
        %378 = vrot.lane.b32.xlu0 %v373, 108
        %v379 = vpop.permute.xlu0 %378
        %v380 = vrot.slane %v377, 4
        %v381 = vrot.slane %v379, 4
        %v382 = vsel %vm321, %v380, %v381
        %vm383 = vcmask 883712
        %v384 = vsel %vm383, %v377, %v382
        %386 = vst [vmem:[#allocation3 + $0x28] sm:$0xff] %v384
        %v387 = vld [vmem:[%s303] sm:$0xff]
        %v388 = vld [vmem:[%s303 + $0x8] sm:$0xf]
        %391 = vrot.lane.b32.xlu0 %v387, 92
        %v392 = vpop.permute.xlu0 %391
        %393 = vrot.lane.b32.xlu0 %v388, 92
        %v394 = vpop.permute.xlu0 %393
        %v395 = vrot.slane %v392, 4
        %v396 = vrot.slane %v394, 4
        %v397 = vsel %vm321, %v395, %v396
        %vm398 = vcmask 752640
        %v399 = vsel %vm398, %v392, %v397
        %401 = vst [vmem:[#allocation3 + $0x30] sm:$0xff] %v399
        %v402 = vld [vmem:[%s303] sm:$0xff]
        %v403 = vld [vmem:[%s303 + $0x8] sm:$0xf]
        %406 = vrot.lane.b32.xlu0 %v402, 91
        %v407 = vpop.permute.xlu0 %406
        %408 = vrot.lane.b32.xlu0 %v403, 91
        %v409 = vpop.permute.xlu0 %408
        %v410 = vrot.slane %v407, 4
        %v411 = vrot.slane %v409, 4
        %v412 = vsel %vm321, %v410, %v411
        %vm413 = vcmask 744448
        %v414 = vsel %vm413, %v407, %v412
        %416 = vst [vmem:[#allocation3 + $0x38] sm:$0xff] %v414
        %v417 = vld [vmem:[%s303] sm:$0xff]
        %v418 = vld [vmem:[%s303 + $0x8] sm:$0xf]
        %421 = vrot.lane.b32.xlu0 %v417, 90
        %v422 = vpop.permute.xlu0 %421
        %423 = vrot.lane.b32.xlu0 %v418, 90
        %v424 = vpop.permute.xlu0 %423
        %v425 = vrot.slane %v422, 4
        %v426 = vrot.slane %v424, 4
        %v427 = vsel %vm321, %v425, %v426
        %vm428 = vcmask 736256
        %v429 = vsel %vm428, %v422, %v427
        %431 = vst [vmem:[#allocation3 + $0x40] sm:$0xff] %v429
        %v432 = vld [vmem:[%s1] sm:$0xf]
        %v433 = vld [vmem:[%s1 + $0x4] sm:$0xf]
        %v434 = vld [vmem:[#allocation3] sm:$0xff]
        %v435 = vld [vmem:[#allocation3 + $0x8] sm:$0xff]
        %v436 = vld [vmem:[#allocation3 + $0x10] sm:$0xff]
        %v437 = vld [vmem:[#allocation3 + $0x18] sm:$0xff]
        %v438 = vld [vmem:[#allocation3 + $0x20] sm:$0xff]
        %v439 = vld [vmem:[#allocation3 + $0x28] sm:$0xff]
        %v440 = vld [vmem:[#allocation3 + $0x30] sm:$0xff]
        %v441 = vld [vmem:[#allocation3 + $0x38] sm:$0xff]
        %v442 = vld [vmem:[#allocation3 + $0x40] sm:$0xff]
        %v445 = vunpack.c.l.b16 %v432
        %v446 = vunpack.c.l.b16 %v433
        %v447 = vpack.c.b16 %v446, %v445
        %v457 = vunpack.c.l.b16 %v434
        %v458 = vunpack.c.h.b16 %v434
        %v459 = vunpack.c.l.b16 %v435
        %v460 = vunpack.c.h.b16 %v435
        %v461 = vunpack.c.l.b16 %v436
        %v462 = vunpack.c.h.b16 %v436
        %v463 = vunpack.c.l.b16 %v437
        %v464 = vunpack.c.h.b16 %v437
        %v465 = vunpack.c.l.b16 %v438
        %v466 = vunpack.c.h.b16 %v438
        %v467 = vunpack.c.l.b16 %v439
        %v468 = vunpack.c.h.b16 %v439
        %v469 = vunpack.c.l.b16 %v440
        %v470 = vunpack.c.h.b16 %v440
        %v471 = vunpack.c.l.b16 %v441
        %v472 = vunpack.c.h.b16 %v441
        %v473 = vunpack.c.l.b16 %v442
        %v474 = vunpack.c.h.b16 %v442
        %v475 = vpack.c.b16 %v459, %v457
        %v476 = vpack.c.b16 %v460, %v458
        %v477 = vpack.c.b16 %v463, %v461
        %v478 = vpack.c.b16 %v464, %v462
        %v479 = vpack.c.b16 %v467, %v465
        %v480 = vpack.c.b16 %v468, %v466
        %v481 = vpack.c.b16 %v471, %v469
        %v482 = vpack.c.b16 %v472, %v470
        %v483 = vpack.c.b16 %v473, %v473
        %v484 = vpack.c.b16 %v474, %v474
        %vm493 = vcmask 588800
        %v495 = vsel %vm493, %v447, 0
        %vm497 = vcmask 1043456
        %v499 = vsel %vm497, %v483, 0
        %v502 = vsel %vm497, %v484, 0
        %504 = vmatprep.subr.bf16.mxu0 0
        %505 = vmatpush1.bf16.msra.mxu0 0
        %506 = vmatprep.subr.bf16.mxu0 0
        %507 = vmatpush1.bf16.msra.mxu0 0
        %508 = vmatprep.subr.bf16.mxu0 0
        %509 = vmatpush1.bf16.msra.mxu0 0
        %510 = vmatprep.subr.bf16.mxu0 %v502
        %511 = vmatpush1.bf16.msra.mxu0 %v499
        %512 = vmatprep.subr.bf16.mxu0 %v482
        %513 = vmatpush1.bf16.msra.mxu0 %v481
        %514 = vmatprep.subr.bf16.mxu0 %v480
        %515 = vmatpush1.bf16.msra.mxu0 %v479
        %516 = vmatprep.subr.bf16.mxu0 %v478
        %517 = vmatpush1.bf16.msra.mxu0 %v477
        %518 = vmatprep.subr.bf16.mxu0 %v476
        %519 = vmatpush1.bf16.msra.mxu0 %v475
        %520 = vmatprep.subr.bf16.mxu0 0
        %521 = vmatpush2.bf16.msra.mxu0 0
        %522 = vmatprep.subr.bf16.mxu0 0
        %523 = vmatpush2.bf16.msra.mxu0 0
        %524 = vmatprep.subr.bf16.mxu0 0
        %525 = vmatpush2.bf16.msra.mxu0 0
        %526 = vmatprep.subr.bf16.mxu0 0
        %527 = vmatpush2.bf16.msra.mxu0 0
        %528 = vmatprep.subr.bf16.mxu0 0
        %529 = vmatpush2.bf16.msra.mxu0 0
        %530 = vmatprep.subr.bf16.mxu0 0
        %531 = vmatpush2.bf16.msra.mxu0 0
        %532 = vmatprep.subr.bf16.mxu0 0
        %533 = vmatpush2.bf16.msra.mxu0 0
        %534 = vmatprep.subr.bf16.mxu0 0
        %535 = vmatpush2.bf16.msra.mxu0 0
        %536 = vmatprep.mubr.bf16.mxu0 0
        %537 = vmatmul.mubr.bf16.gmra.mxu0 %v495
        %v538 = vpop.f32.mrf.mxu0
        %v539 = vadd.f32 0.0, %v538
        %v540 = vpop.f32.mrf.mxu0
        %v541 = vadd.f32 0.0, %v540
        %v542 = vpop.f32.mrf.mxu0
        %v543 = vadd.f32 0.0, %v542
        %v544 = vpop.f32.mrf.mxu0
        %v545 = vadd.f32 0.0, %v544
        %546 = vdwg.mxu0
        %v547 = vld [vmem:[%s2] sm:$0xff]
        %v548 = vld [vmem:[%s2 + $0x8] sm:$0xff]
        %550 = vset.pattern.permute.xlu0 0
        %551 = vperm.xlu0 %550, %v547
        %v552 = vpop.permute.xlu0 %551
        %555 = vset.pattern.permute.xlu0 0
        %556 = vperm.xlu0 %555, %v548
        %v557 = vpop.permute.xlu0 %556
        %v559 = vmul.f32 %v539, %v552
        %v560 = vmul.f32 %v541, %v552
        %v561 = vmul.f32 %v543, %v557
        %v562 = vmul.f32 %v545, %v557
        %v563 = vld [vmem:[%s3] sm:$0xff]
        %v564 = vld [vmem:[%s3 + $0x8] sm:$0xff]
        %566 = vset.pattern.permute.xlu0 0
        %567 = vperm.xlu0 %566, %v563
        %v568 = vpop.permute.xlu0 %567
        %571 = vset.pattern.permute.xlu0 0
        %572 = vperm.xlu0 %571, %v564
        %v573 = vpop.permute.xlu0 %572
        %v575 = vadd.f32 %v559, %v568
        %v576 = vadd.f32 %v560, %v568
        %v577 = vadd.f32 %v561, %v573
        %v578 = vadd.f32 %v562, %v573
        %v579 = vmax.f32 %v575, 0.0
        %v580 = vmax.f32 %v576, 0.0
        %v581 = vmax.f32 %v577, 0.0
        %v582 = vmax.f32 %v578, 0.0
        %583 = vst [vmem:[%s145] sm:$0xff] %v579
        %584 = vst [vmem:[%s145 + $0x8] sm:$0xff] %v580
        %585 = vst [vmem:[%s145 + $0x10] sm:$0xff] %v581
        %586 = vst [vmem:[%s145 + $0x18] sm:$0xff] %v582
        %s587 = sand.u32 %s86, 1
        %s588 = sand.u32 %s86, 1
        %s589 = smul.addr %s588, 32
        %s590 = scalar_lea.vmem [#allocation5], %s589
        // Predicated region
        $region115: #{conv_block.1} parent=31 // pred_check
          %p591 = pneg %p96
        $region116: #{conv_block.1} parent=31 // pred_check_branch
          %593 = sbr.rel (%p591) target = $region118
        $region117: #{conv_block.1} parent=31 // pred_region
          %s594 = smul.u32 2, %s15
          %s595 = smul.addr %s594, 8
          %s596 = scalar_lea.vmem %s4, %s595
          // Predicated region
          $region119: #{conv_block.1} parent=117 // pred_check
            _
          $region120: #{conv_block.1} parent=117 // pred_check_branch
            %598 = sbr.rel (0) target = $region122
          $region121: #{conv_block.1} parent=117 // pred_region
            // Predicated region
            $region123: #{conv_block.1} parent=121 // pred_check
              _
            $region124: #{conv_block.1} parent=121 // pred_check_branch
              %600 = sbr.rel (0) target = $region126
            $region125: #{conv_block.1} parent=121 // pred_region
              loop: start=0, step=1, limit=1
              $region127: #{conv_block.1} parent=125 // loop_pre_header
                _
              $region128: #{conv_block.1} parent=125 // loop_header
                %s602 = sphi 0, %s606
                %p603 = scmp.ge.s32.totalorder %s602, 1
                %s607 = sphi %s590, %s590
                %s608 = sphi %s596, %s596
              $region129: #{conv_block.1} parent=125 // loop_header_branch
                %605 = sbr.rel (%p603) target = $region133
              $region130: #{conv_block.1} parent=125 // loop_body
                %v609 = vld [vmem:[%s607] sm:$0xff]
                %610 = vst [vmem:[%s608] sm:$0xff] %v609
                %v611 = vld [vmem:[%s607 + $0x8] sm:$0xff]
                %612 = vst [vmem:[%s608 + $0x8] sm:$0xff] %v611
                %v613 = vld [vmem:[%s607 + $0x10] sm:$0xff]
                %614 = vst [vmem:[%s608 + $0x30] sm:$0xff] %v613
                %v615 = vld [vmem:[%s607 + $0x18] sm:$0xff]
                %616 = vst [vmem:[%s608 + $0x38] sm:$0xff] %v615
              $region131: #{conv_block.1} parent=125 // loop_footer
                %s606 = sadd.s32 1, %s602
              $region132: #{conv_block.1} parent=125 // loop_footer_branch
                %601 = sbr.rel target = $region128
              $region133: #{conv_block.1} parent=125 // loop_exit
                _
            $region126: #{conv_block.1} parent=121 // pred_fallthru
              _
            // Predicated region
            $region134: #{conv_block.1} parent=121 // pred_check
              _
            $region135: #{conv_block.1} parent=121 // pred_check_branch
              %618 = sbr.rel target = $region137
            $region136: #{conv_block.1} parent=121 // pred_region
              _
            $region137: #{conv_block.1} parent=121 // pred_fallthru
              _
          $region122: #{conv_block.1} parent=117 // pred_fallthru
            _
          %619 = vnop
        $region118: #{conv_block.1} parent=31 // pred_fallthru
          _
      $region32: #{conv_block.1} parent=5 // pred_fallthru
        _
      %p620 = scmp.le.s32.totalorder 2, %s10
      // Predicated region
      $region138: #{conv_block.1} parent=5 // pred_check
        %p621 = pneg %p620
      $region139: #{conv_block.1} parent=5 // pred_check_branch
        %623 = sbr.rel (%p621) target = $region141
      $region140: #{conv_block.1} parent=5 // pred_region
        %s624 = ssub.s32 %s10, 2
        // Predicated region
        $region142: #{conv_block.1} parent=140 // pred_check
          %p625 = pneg %p102
        $region143: #{conv_block.1} parent=140 // pred_check_branch
          %627 = sbr.rel (%p625) target = $region145
        $region144: #{conv_block.1} parent=140 // pred_region
          %s628 = sand.u32 %s87, 1
          %s629 = sand.u32 %s87, 1
          %s630 = smul.addr %s629, 32
          %s631 = scalar_lea.vmem [#allocation5], %s630
        $region145: #{conv_block.1} parent=140 // pred_fallthru
          _
      $region141: #{conv_block.1} parent=5 // pred_fallthru
        _
    $region6: #{conv_block.1} parent=1 // loop_footer
      %s14 = sadd.s32 1, %s10
    $region7: #{conv_block.1} parent=1 // loop_footer_branch
      %9 = sbr.rel target = $region3
    $region8: #{conv_block.1} parent=1 // loop_exit
      _
  %632 = vsyncmov [#allocation4]
  %s633 = vpop.sfrf %632
  %p634 = scmp.eq.s32.totalorder %s633, 0
  %p635 = pneg %p634
  %637 = shalt.err (%p635)
  %s638 = scalar_lea.sflag [#allocation4], 1
  %639 = vsyncmov %s638
  %s640 = vpop.sfrf %639
  %p641 = scmp.eq.s32.totalorder %s640, 0
  %p642 = pneg %p641
  %644 = shalt.err (%p642)

</llo_original>
